<compile_context>
chip_gen: v6e
topology: v6e:2x2x1
jax: 0.10.0
libtpu: 0.0.40
codegen_flags: <defaults>
</compile_context>

<pallas_src>
import jax
import jax.numpy as jnp
from jax.experimental import pallas as pl
from jax.experimental.pallas import tpu as pltpu


def _bilinear_matrix(in_size: int, out_size: int, scale: float) -> jnp.ndarray:
    """Interpolation matrix A [out_size, in_size] for 1-D bilinear resampling,
    matching PyTorch's align_corners=False convention."""
    dst = jnp.arange(out_size, dtype=jnp.float32)
    src = (dst + 0.5) / float(scale) - 0.5
    src = jnp.maximum(src, 0.0)                       # PyTorch clamps negatives to 0
    i0 = jnp.floor(src).astype(jnp.int32)
    i0 = jnp.minimum(i0, in_size - 1)
    i1 = jnp.minimum(i0 + 1, in_size - 1)
    w1 = src - i0.astype(jnp.float32)
    w0 = 1.0 - w1
    rows = jnp.arange(out_size)
    A = jnp.zeros((out_size, in_size), jnp.float32)
    A = A.at[rows, i0].add(w0)
    A = A.at[rows, i1].add(w1)
    return A


def _round_up(a: int, m: int) -> int:
    return ((a + m - 1) // m) * m


def _pick_tb(B: int, H: int, W: int, H_out: int, W_out: int, itemsize: int) -> int:
    """Pick the per-step batch tile so padded VMEM usage stays ~<= 16 MiB
    (safe on v5e/v6e/v7x defaults) and the grid has >= 2 steps when possible."""
    in_slab = _round_up(H, 8) * _round_up(W, 128) * itemsize
    out_slab = _round_up(H_out, 8) * _round_up(W_out, 128) * itemsize
    # f32 temporaries per slab: broadcast A_h, broadcast A_w^T, intermediate.
    ah_rep = _round_up(H_out, 8) * _round_up(H, 128) * 4
    awt_rep = _round_up(W, 8) * _round_up(W_out, 128) * 4
    tmp_rep = _round_up(H_out, 8) * _round_up(W, 128) * 4
    per_slab = 3 * in_slab + 3 * out_slab + ah_rep + awt_rep + tmp_rep
    budget = 16 * 1024 * 1024
    cap = max(1, budget // per_slab)
    tb = min(cap, B)
    if B >= 2:
        # Keep at least 2 grid steps so both v7x TensorCores get work.
        tb = min(tb, -(-B // 2))
    return max(1, tb)


def _interp_kernel(x_ref, ah_ref, awt_ref, o_ref):
    # x_ref  : (TB, H, W)         VMEM, native dtype
    # ah_ref : (H_out, H)         VMEM
    # awt_ref: (W, W_out)         VMEM (A_w pre-transposed in the wrapper)
    # o_ref  : (TB, H_out, W_out) VMEM, native dtype
    tb = x_ref.shape[0]
    x = x_ref[...]
    ah = jnp.broadcast_to(ah_ref[...][None], (tb,) + ah_ref.shape)     # (TB,H_out,H)
    awt = jnp.broadcast_to(awt_ref[...][None], (tb,) + awt_ref.shape)  # (TB,W,W_out)
    # H pass: batched matmul (TB,H_out,H) x (TB,H,W) -> (TB,H_out,W), f32 acc.
    tmp = jnp.einsum("boh,bhw->bow", ah, x, preferred_element_type=jnp.float32)
    # W pass: batched matmul (TB,H_out,W) x (TB,W,W_out) -> (TB,H_out,W_out).
    out = jnp.einsum("bow,bwp->bop", tmp, awt, preferred_element_type=jnp.float32)
    o_ref[...] = out.astype(o_ref.dtype)


def interpolate(x: jnp.ndarray, scale: float, mode: str = "bilinear") -> jnp.ndarray:
    """Pallas equivalent of Interpolate(scale, mode).forward(x) for NCHW x."""
    if mode != "bilinear":
        # TODO(synk): only 'bilinear' (align_corners=False) is implemented; the
        # transcenter_dla model uses Interpolate(scale=2, mode='bilinear').
        raise NotImplementedError(f"mode={mode!r} not implemented")

    N, C, H, W = x.shape
    H_out, W_out = int(H * scale), int(W * scale)

    # Keep native float dtype end-to-end (no f32 staging); cast ints to f32.
    if x.dtype not in (jnp.float32, jnp.bfloat16):
        x = x.astype(jnp.float32)
    cdt = x.dtype
    itemsize = jnp.dtype(cdt).itemsize

    a_h = _bilinear_matrix(H, H_out, scale).astype(cdt)        # (H_out, H)
    a_wt = _bilinear_matrix(W, W_out, scale).T.astype(cdt)     # (W, W_out), pre-transposed

    B = N * C
    xb = x.reshape(B, H, W)                                    # free view, contiguous blocks

    tb = _pick_tb(B, H, W, H_out, W_out, itemsize)
    grid = (pl.cdiv(B, tb),)

    cost = pl.CostEstimate(
        flops=2 * B * (H_out * H * W + H_out * W * W_out),
        transcendentals=0,
        bytes_accessed=(B * H * W + B * H_out * W_out) * itemsize
        + (H_out * H + W * W_out) * itemsize,
    )

    out = pl.pallas_call(
        _interp_kernel,
        out_shape=jax.ShapeDtypeStruct((B, H_out, W_out), cdt),
        grid_spec=pltpu.PrefetchScalarGridSpec(
            num_scalar_prefetch=0,
            grid=grid,
            in_specs=[
                pl.BlockSpec((tb, H, W), lambda b: (b, 0, 0)),
                pl.BlockSpec((H_out, H), lambda b: (0, 0)),
                pl.BlockSpec((W, W_out), lambda b: (0, 0)),
            ],
            out_specs=pl.BlockSpec((tb, H_out, W_out), lambda b: (b, 0, 0)),
        ),
        compiler_params=pltpu.CompilerParams(
            dimension_semantics=("parallel",),
            vmem_limit_bytes=32 * 1024 * 1024,
        ),
        cost_estimate=cost,
    )(xb, a_h, a_wt)

    return out.reshape(N, C, H_out, W_out)


def _reference_bilinear(x, scale):
    """Pure-JAX reference (same math, no Pallas) for a sanity check."""
    N, C, H, W = x.shape
    H_out, W_out = int(H * scale), int(W * scale)
    a_h = _bilinear_matrix(H, H_out, scale)
    a_w = _bilinear_matrix(W, W_out, scale)
    return jnp.einsum("oh,nchw,pw->ncop", a_h, x.astype(jnp.float32), a_w)


if __name__ == "__main__":
    key = jax.random.PRNGKey(0)
    N, C, H, W = 2, 4, 16, 16
    scale = 2
    x = jax.random.normal(key, (N, C, H, W), dtype=jnp.float32)

    y = interpolate(x, scale=scale, mode="bilinear")
    y = jax.block_until_ready(y)

    assert y.shape == (N, C, H * scale, W * scale), y.shape

    y_ref = _reference_bilinear(x, scale)
    assert jnp.allclose(y, y_ref, atol=1e-5, rtol=1e-5), float(
        jnp.max(jnp.abs(y.astype(jnp.float32) - y_ref))
    )

    print("KERNEL_OK")
</pallas_src>

<mosaic_0001>
module attributes {stable_mosaic.version = 11 : i64} {
  func.func @_interp_kernel(%arg0: i32, %arg1: memref<4x16x16xf32, #tpu.memory_space<vmem>>, %arg2: memref<32x16xf32, #tpu.memory_space<vmem>>, %arg3: memref<16x32xf32, #tpu.memory_space<vmem>>, %arg4: memref<4x32x32xf32, #tpu.memory_space<vmem>>) attributes {dimension_semantics = [#tpu.dimension_semantics<parallel>], iteration_bounds = array<i64: 2>, scalar_prefetch = 0 : i64, scratch_operands = 0 : i64, tpu.core_type = #tpu.core_type<tc>, window_params = [{transform_indices = @transform_0, window_bounds = array<i64: 4, 16, 16>}, {pipeline_mode = #tpu.pipeline_mode<synchronous>, transform_indices = @transform_1, window_bounds = array<i64: 32, 16>}, {pipeline_mode = #tpu.pipeline_mode<synchronous>, transform_indices = @transform_2, window_bounds = array<i64: 16, 32>}, {transform_indices = @transform_3, window_bounds = array<i64: 4, 32, 32>}]} {
    %c0 = arith.constant 0 : index
    %c0_0 = arith.constant 0 : index
    %c0_1 = arith.constant 0 : index
    %0 = vector.load %arg1[%c0, %c0_0, %c0_1] : memref<4x16x16xf32, #tpu.memory_space<vmem>>, vector<4x16x16xf32>
    %c0_2 = arith.constant 0 : index
    %c0_3 = arith.constant 0 : index
    %1 = vector.load %arg2[%c0_2, %c0_3] : memref<32x16xf32, #tpu.memory_space<vmem>>, vector<32x16xf32>
    %2 = vector.shape_cast %1 : vector<32x16xf32> to vector<1x32x16xf32>
    %3 = vector.shape_cast %2 : vector<1x32x16xf32> to vector<1x32x16xf32>
    %4 = vector.broadcast %3 : vector<1x32x16xf32> to vector<4x32x16xf32>
    %c0_4 = arith.constant 0 : index
    %c0_5 = arith.constant 0 : index
    %5 = vector.load %arg3[%c0_4, %c0_5] : memref<16x32xf32, #tpu.memory_space<vmem>>, vector<16x32xf32>
    %6 = vector.shape_cast %5 : vector<16x32xf32> to vector<1x16x32xf32>
    %7 = vector.shape_cast %6 : vector<1x16x32xf32> to vector<1x16x32xf32>
    %8 = vector.broadcast %7 : vector<1x16x32xf32> to vector<4x16x32xf32>
    "tpu.trace_start"() <{level = 10 : i32, message = "boh,bhw->bow"}> : () -> ()
    %cst = arith.constant dense<0.000000e+00> : vector<4x32x16xf32>
    %9 = tpu.matmul %4, %0, %cst {dimension_numbers = #tpu.dot_dimension_numbers<[2], [1], [1], [2], [0, 0, 0, 1, 1, 2], [0], [0]>} : vector<4x32x16xf32>, vector<4x16x16xf32>, vector<4x32x16xf32> -> vector<4x32x16xf32>
    "tpu.trace_stop"() : () -> ()
    "tpu.trace_start"() <{level = 10 : i32, message = "bow,bwp->bop"}> : () -> ()
    %cst_6 = arith.constant dense<0.000000e+00> : vector<4x32x32xf32>
    %10 = tpu.matmul %9, %8, %cst_6 {dimension_numbers = #tpu.dot_dimension_numbers<[2], [1], [1], [2], [0, 0, 0, 1, 1, 2], [0], [0]>} : vector<4x32x16xf32>, vector<4x16x32xf32>, vector<4x32x32xf32> -> vector<4x32x32xf32>
    "tpu.trace_stop"() : () -> ()
    %c0_7 = arith.constant 0 : index
    %c0_8 = arith.constant 0 : index
    %c0_9 = arith.constant 0 : index
    %11 = vector.load %arg4[%c0_7, %c0_8, %c0_9] : memref<4x32x32xf32, #tpu.memory_space<vmem>>, vector<4x32x32xf32>
    tpu.vector_store %arg4[%c0_7, %c0_8, %c0_9], %10 {strides = array<i32>} : memref<4x32x32xf32, #tpu.memory_space<vmem>>, vector<4x32x32xf32>,
    return
  }
  func.func @transform_0(%arg0: i32) -> (i32, i32, i32) {
    %c0_i32 = arith.constant 0 : i32
    %c0_i32_0 = arith.constant 0 : i32
    %c0_i32_1 = arith.constant 0 : i32
    return %arg0, %c0_i32, %c0_i32_0 : i32, i32, i32
  }
  func.func @transform_1(%arg0: i32) -> (i32, i32) {
    %c0_i32 = arith.constant 0 : i32
    %c0_i32_0 = arith.constant 0 : i32
    %c0_i32_1 = arith.constant 0 : i32
    return %c0_i32, %c0_i32_0 : i32, i32
  }
  func.func @transform_2(%arg0: i32) -> (i32, i32) {
    %c0_i32 = arith.constant 0 : i32
    %c0_i32_0 = arith.constant 0 : i32
    %c0_i32_1 = arith.constant 0 : i32
    return %c0_i32, %c0_i32_0 : i32, i32
  }
  func.func @transform_3(%arg0: i32) -> (i32, i32, i32) {
    %c0_i32 = arith.constant 0 : i32
    %c0_i32_0 = arith.constant 0 : i32
    %c0_i32_1 = arith.constant 0 : i32
    return %arg0, %c0_i32, %c0_i32_0 : i32, i32, i32
  }
}

</mosaic_0001>

<llo_original>
// kernel: tpu_custom_call.1
$region0: #{tpu_custom_call.1}
  #allocation0 [shape = 'u32[]', space=smem, size = 0x4, offset = 0x4, fixed_abs, tag = 'smem constant byte address 0x4 - core index']
  #allocation1 [shape = 'u32[144,128]{1,0:T(1,128)}', space=vmem, size = 0x12000, scoped, tag = 'internal scratch']
  %s0 = inlined_call_operand.hbm [shape: f32[8,16,16], index: 0, kind: input, shape index: {}]
  %s1 = inlined_call_operand.vmem [shape: f32[32,16], index: 1, kind: input, shape index: {}]
  %s2 = inlined_call_operand.vmem [shape: f32[16,32], index: 2, kind: input, shape index: {}]
  %s3 = inlined_call_operand.hbm [shape: f32[8,32,32], index: 3, kind: output, shape index: {}]
  %s4 = sld [smem:[#allocation0]]
  $region49: #{tpu_custom_call.1} parent=0
    _
  %s6 = ssub.s32 1, %s4
  %s7 = scalar_select 0, %s6, %s4
  $region1: #{tpu_custom_call.1} parent=0
    #allocation2 [shape = 'u8[65536]{0}', space=vmem, size = 0x10000, scoped, tag = 'input window, operand 0']
    #allocation3 [shape = 's32[2]{0}', space=sflag, size = 0x8, scoped, tag = 'scoped memory for tpu_custom_call.1']
    #allocation4 [shape = 's32[2]{0}', space=sflag, size = 0x8, scoped, tag = 'scoped memory for tpu_custom_call.1']
    #allocation5 [shape = 'u8[131072]{0}', space=vmem, size = 0x20000, scoped, tag = 'output window, operand 0']
    %8 = vsyncpa [#allocation3], 0
    %s9 = scalar_lea.sflag [#allocation3], 1
    %10 = vsyncpa %s9, 0
    %11 = vsyncpa [#allocation4], 0
    %s12 = scalar_lea.sflag [#allocation4], 1
    %13 = vsyncpa %s12, 0
    loop: start=0, step=1, limit=4
    $region2: #{tpu_custom_call.1} parent=1 // loop_pre_header
      _
    $region3: #{tpu_custom_call.1} parent=1 // loop_header
      %s15 = sphi 0, %s19
      %p16 = scmp.ge.s32.totalorder %s15, 4
      %s25 = sphi 0, %s27
      %s28 = sphi 0, %s25
      %s29 = sphi 0, %s28
      %s45 = sphi 0, %s29
      %s49 = sphi 0, %s49
      %s51 = sphi 0, %s49
      %s52 = sphi 0, %s51
      %s66 = sphi 0, %s52
      %s70 = sphi 0, %s70
      %s72 = sphi 0, %s70
      %s73 = sphi 0, %s72
      %s87 = sphi 0, %s73
      %s93 = sphi 0, %s95
      %s96 = sphi 0, %s93
      %s97 = sphi 0, %s96
      %s113 = sphi 0, %s97
    $region4: #{tpu_custom_call.1} parent=1 // loop_header_branch
      %18 = sbr.rel (%p16) target = $region8
    $region5: #{tpu_custom_call.1} parent=1 // loop_body
      %s20 = ssub.s32 %s15, 1
      %s21 = ssub.s32 %s15, 2
      %s22 = sadd.s32 %s15, 1
      %s23 = ssub.s32 %s15, %s22
      %p24 = scmp.eq.s32.totalorder %s23, 0
      %s26 = sadd.s32 %s25, 1
      %s27 = scalar_select %p24, %s25, %s26
      %p30 = pneg %p24
      %p31 = scmp.eq.s32.totalorder %s15, 1
      %p32 = por %p30, %p31
      %p33 = scmp.ne.s32.totalorder %s25, %s28
      %p34 = scmp.eq.s32.totalorder %s15, 0
      %p35 = por %p33, %p34
      %p36 = scmp.ne.s32.totalorder %s25, %s28
      %p37 = scmp.eq.s32.totalorder %s20, 1
      %p38 = por %p36, %p37
      %p39 = scmp.ne.s32.totalorder %s28, %s29
      %p40 = scmp.eq.s32.totalorder %s20, 0
      %p41 = por %p39, %p40
      %p42 = scmp.ne.s32.totalorder %s28, %s29
      %p43 = scmp.eq.s32.totalorder %s21, 1
      %p44 = por %p42, %p43
      %p46 = scmp.ne.s32.totalorder %s29, %s45
      %p47 = scmp.eq.s32.totalorder %s21, 0
      %p48 = por %p46, %p47
      %s50 = sadd.s32 %s49, 1
      %p53 = scmp.eq.s32.totalorder %s15, 1
      %p54 = scmp.ne.s32.totalorder %s49, %s51
      %p55 = scmp.eq.s32.totalorder %s15, 0
      %p56 = por %p54, %p55
      %p57 = scmp.ne.s32.totalorder %s49, %s51
      %p58 = scmp.eq.s32.totalorder %s20, 1
      %p59 = por %p57, %p58
      %p60 = scmp.ne.s32.totalorder %s51, %s52
      %p61 = scmp.eq.s32.totalorder %s20, 0
      %p62 = por %p60, %p61
      %p63 = scmp.ne.s32.totalorder %s51, %s52
      %p64 = scmp.eq.s32.totalorder %s21, 1
      %p65 = por %p63, %p64
      %p67 = scmp.ne.s32.totalorder %s52, %s66
      %p68 = scmp.eq.s32.totalorder %s21, 0
      %p69 = por %p67, %p68
      %s71 = sadd.s32 %s70, 1
      %p74 = scmp.eq.s32.totalorder %s15, 1
      %p75 = scmp.ne.s32.totalorder %s70, %s72
      %p76 = scmp.eq.s32.totalorder %s15, 0
      %p77 = por %p75, %p76
      %p78 = scmp.ne.s32.totalorder %s70, %s72
      %p79 = scmp.eq.s32.totalorder %s20, 1
      %p80 = por %p78, %p79
      %p81 = scmp.ne.s32.totalorder %s72, %s73
      %p82 = scmp.eq.s32.totalorder %s20, 0
      %p83 = por %p81, %p82
      %p84 = scmp.ne.s32.totalorder %s72, %s73
      %p85 = scmp.eq.s32.totalorder %s21, 1
      %p86 = por %p84, %p85
      %p88 = scmp.ne.s32.totalorder %s73, %s87
      %p89 = scmp.eq.s32.totalorder %s21, 0
      %p90 = por %p88, %p89
      %s91 = ssub.s32 %s15, %s22
      %p92 = scmp.eq.s32.totalorder %s91, 0
      %s94 = sadd.s32 %s93, 1
      %s95 = scalar_select %p92, %s93, %s94
      %p98 = pneg %p92
      %p99 = scmp.eq.s32.totalorder %s15, 1
      %p100 = por %p98, %p99
      %p101 = scmp.ne.s32.totalorder %s93, %s96
      %p102 = scmp.eq.s32.totalorder %s15, 0
      %p103 = por %p101, %p102
      %p104 = scmp.ne.s32.totalorder %s93, %s96
      %p105 = scmp.eq.s32.totalorder %s20, 1
      %p106 = por %p104, %p105
      %p107 = scmp.ne.s32.totalorder %s96, %s97
      %p108 = scmp.eq.s32.totalorder %s20, 0
      %p109 = por %p107, %p108
      %p110 = scmp.ne.s32.totalorder %s96, %s97
      %p111 = scmp.eq.s32.totalorder %s21, 1
      %p112 = por %p110, %p111
      %p114 = scmp.ne.s32.totalorder %s97, %s113
      %p115 = scmp.eq.s32.totalorder %s21, 0
      %p116 = por %p114, %p115
      %p117 = scmp.le.s32.totalorder 1, %s15
      %p118 = scmp.lt.s32.totalorder %s15, 3
      %p119 = pnand %p117, %p118
      %p120 = pneg %p119
      // Predicated region
      $region9: #{tpu_custom_call.1} parent=5 // pred_check
        _
      $region10: #{tpu_custom_call.1} parent=5 // pred_check_branch
        %122 = sbr.rel (%p119) target = $region12
      $region11: #{tpu_custom_call.1} parent=5 // pred_region
        %s123 = ssub.s32 %s15, 1
        // Predicated region
        $region13: #{tpu_custom_call.1} parent=11 // pred_check
          %p124 = pneg %p62
        $region14: #{tpu_custom_call.1} parent=11 // pred_check_branch
          %126 = sbr.rel (%p124) target = $region16
        $region15: #{tpu_custom_call.1} parent=11 // pred_region
          _
        $region16: #{tpu_custom_call.1} parent=11 // pred_fallthru
          _
        // Predicated region
        $region17: #{tpu_custom_call.1} parent=11 // pred_check
          %p127 = pneg %p83
        $region18: #{tpu_custom_call.1} parent=11 // pred_check_branch
          %129 = sbr.rel (%p127) target = $region20
        $region19: #{tpu_custom_call.1} parent=11 // pred_region
          _
        $region20: #{tpu_custom_call.1} parent=11 // pred_fallthru
          _
      $region12: #{tpu_custom_call.1} parent=5 // pred_fallthru
        _
      %p130 = scmp.lt.s32.totalorder %s15, 2
      // Predicated region
      $region21: #{tpu_custom_call.1} parent=5 // pred_check
        %p131 = pneg %p130
      $region22: #{tpu_custom_call.1} parent=5 // pred_check_branch
        %133 = sbr.rel (%p131) target = $region24
      $region23: #{tpu_custom_call.1} parent=5 // pred_region
        // Predicated region
        $region25: #{tpu_custom_call.1} parent=23 // pred_check
          %p134 = pneg %p35
        $region26: #{tpu_custom_call.1} parent=23 // pred_check_branch
          %136 = sbr.rel (%p134) target = $region28
        $region27: #{tpu_custom_call.1} parent=23 // pred_region
          %s137 = sand.u32 %s25, 1
          %s138 = scalar_lea.sflag [#allocation3], %s137
          %s139 = sand.u32 %s25, 1
          %s140 = smul.addr %s139, 64
          %s141 = scalar_lea.vmem [#allocation2], %s140
          %s142 = smul.u32 4, %s15
          %s144 = ssub.s32 1024, 1024
          %145 = vsyncadd %s138, %s144
          %s146 = smul.addr %s142, 2
          %s147 = smul.addr %s146, 128
          %s148 = scalar_lea.hbm %s0, %s147
          %s149 = sshll.u32 %s141, 4
          %s150 = int_to_ptr.vmem [resolvable:$true] %s149
          %155 = dma.hbm_to_vmem [thread:$0]  %s148, 1024, %s150, %s138, 128, 128, 8
        $region28: #{tpu_custom_call.1} parent=23 // pred_fallthru
          _
      $region24: #{tpu_custom_call.1} parent=5 // pred_fallthru
        _
      %p156 = scmp.le.s32.totalorder 1, %s15
      %p157 = scmp.lt.s32.totalorder %s15, 3
      %p158 = pnand %p156, %p157
      %p159 = pneg %p158
      // Predicated region
      $region29: #{tpu_custom_call.1} parent=5 // pred_check
        _
      $region30: #{tpu_custom_call.1} parent=5 // pred_check_branch
        %161 = sbr.rel (%p158) target = $region32
      $region31: #{tpu_custom_call.1} parent=5 // pred_region
        %s162 = ssub.s32 %s15, 1
        %s163 = sand.u32 %s28, 1
        %s164 = scalar_lea.sflag [#allocation3], %s163
        %s165 = sand.u32 %s28, 1
        %s166 = smul.addr %s165, 64
        %s167 = scalar_lea.vmem [#allocation2], %s166
        // Predicated region
        $region33: #{tpu_custom_call.1} parent=31 // pred_check
          %p168 = pneg %p41
        $region34: #{tpu_custom_call.1} parent=31 // pred_check_branch
          %170 = sbr.rel (%p168) target = $region36
        $region35: #{tpu_custom_call.1} parent=31 // pred_region
          %171 = dma.done %s164, 1024
        $region36: #{tpu_custom_call.1} parent=31 // pred_fallthru
          _
        %s172 = sand.u32 %s28, 1
        %s173 = scalar_lea.sflag [#allocation3], %s172
        %s174 = sand.u32 %s28, 1
        %s175 = smul.addr %s174, 64
        %s176 = scalar_lea.vmem [#allocation2], %s175
        %p177 = pneg %p41
        %p178 = pneg %p38
        %p179 = pneg %p62
        %p180 = pneg %p59
        %p181 = pneg %p83
        %p182 = pneg %p80
        %p183 = pneg %p109
        %p184 = pneg %p106
        %s185 = sand.u32 %s96, 1
        %s186 = scalar_lea.sflag [#allocation4], %s185
        %s187 = sand.u32 %s96, 1
        %s188 = smul.addr %s187, 128
        %s189 = scalar_lea.vmem [#allocation5], %s188
        %s190 = smul.u32 4, %s20
        %s191 = smul.u32 4, %s20
        %v192 = vld [vmem:[%s167] sm:$0xff]
        %v193 = vld [vmem:[%s167 + $0x8] sm:$0xff]
        %v194 = vld [vmem:[%s167 + $0x10] sm:$0xff]
        %v195 = vld [vmem:[%s167 + $0x18] sm:$0xff]
        %v196 = vld [vmem:[%s167 + $0x20] sm:$0xff]
        %v197 = vld [vmem:[%s167 + $0x28] sm:$0xff]
        %v198 = vld [vmem:[%s167 + $0x30] sm:$0xff]
        %v199 = vld [vmem:[%s167 + $0x38] sm:$0xff]
        %v200 = vld [vmem:[%s1] sm:$0xff]
        %v201 = vld [vmem:[%s1 + $0x8] sm:$0xff]
        %v202 = vld [vmem:[%s1 + $0x10] sm:$0xff]
        %v203 = vld [vmem:[%s1 + $0x18] sm:$0xff]
        %v204 = vld [vmem:[%s2] sm:$0xff]
        %v205 = vld [vmem:[%s2 + $0x8] sm:$0xff]
        %vm206 = vcmask 130048
        %v208 = vsel %vm206, %v200, 0
        %v211 = vsel %vm206, %v201, 0
        %v214 = vsel %vm206, %v202, 0
        %v217 = vsel %vm206, %v203, 0
        %219 = vmatprep.subr.mxu0 0.0
        %220 = vmatpush1.msra.mxu0 0.0
        %221 = vmatprep.subr.mxu0 0.0
        %222 = vmatpush1.msra.mxu0 0.0
        %223 = vmatprep.subr.mxu0 0.0
        %224 = vmatpush1.msra.mxu0 0.0
        %225 = vmatprep.subr.mxu0 0.0
        %226 = vmatpush1.msra.mxu0 0.0
        %227 = vmatprep.subr.mxu0 0.0
        %228 = vmatpush1.msra.mxu0 0.0
        %229 = vmatprep.subr.mxu0 0.0
        %230 = vmatpush1.msra.mxu0 0.0
        %231 = vmatprep.subr.mxu0 0.0
        %232 = vmatpush1.msra.mxu0 0.0
        %233 = vmatprep.subr.mxu0 0.0
        %234 = vmatpush1.msra.mxu0 0.0
        %235 = vmatprep.subr.mxu0 0.0
        %236 = vmatpush1.msra.mxu0 0.0
        %237 = vmatprep.subr.mxu0 0.0
        %238 = vmatpush1.msra.mxu0 0.0
        %239 = vmatprep.subr.mxu0 0.0
        %240 = vmatpush1.msra.mxu0 0.0
        %241 = vmatprep.subr.mxu0 0.0
        %242 = vmatpush1.msra.mxu0 0.0
        %243 = vmatprep.subr.mxu0 0.0
        %244 = vmatpush1.msra.mxu0 0.0
        %245 = vmatprep.subr.mxu0 0.0
        %246 = vmatpush1.msra.mxu0 0.0
        %247 = vmatprep.subr.mxu0 0.0
        %248 = vmatpush1.msra.mxu0 %v193
        %249 = vmatprep.subr.mxu0 0.0
        %250 = vmatpush1.msra.mxu0 %v192
        %251 = vmatprep.subr.mxu0 0.0
        %252 = vmatpush2.msra.mxu0 0.0
        %253 = vmatprep.subr.mxu0 0.0
        %254 = vmatpush2.msra.mxu0 0.0
        %255 = vmatprep.subr.mxu0 0.0
        %256 = vmatpush2.msra.mxu0 0.0
        %257 = vmatprep.subr.mxu0 0.0
        %258 = vmatpush2.msra.mxu0 0.0
        %259 = vmatprep.subr.mxu0 0.0
        %260 = vmatpush2.msra.mxu0 0.0
        %261 = vmatprep.subr.mxu0 0.0
        %262 = vmatpush2.msra.mxu0 0.0
        %263 = vmatprep.subr.mxu0 0.0
        %264 = vmatpush2.msra.mxu0 0.0
        %265 = vmatprep.subr.mxu0 0.0
        %266 = vmatpush2.msra.mxu0 0.0
        %267 = vmatprep.subr.mxu0 0.0
        %268 = vmatpush2.msra.mxu0 0.0
        %269 = vmatprep.subr.mxu0 0.0
        %270 = vmatpush2.msra.mxu0 0.0
        %271 = vmatprep.subr.mxu0 0.0
        %272 = vmatpush2.msra.mxu0 0.0
        %273 = vmatprep.subr.mxu0 0.0
        %274 = vmatpush2.msra.mxu0 0.0
        %275 = vmatprep.subr.mxu0 0.0
        %276 = vmatpush2.msra.mxu0 0.0
        %277 = vmatprep.subr.mxu0 0.0
        %278 = vmatpush2.msra.mxu0 0.0
        %279 = vmatprep.subr.mxu0 0.0
        %280 = vmatpush2.msra.mxu0 0.0
        %281 = vmatprep.subr.mxu0 0.0
        %282 = vmatpush2.msra.mxu0 0.0
        %283 = vmatprep.mubr.f32.mxu0 0.0
        %284 = vmatmul.mubr.f32.gmra.mxu0 %v208
        %v285 = vpop.f32.mrf.mxu0
        %v286 = vadd.f32 0.0, %v285
        %v287 = vpop.f32.mrf.mxu0
        %288 = vmatprep.mubr.f32.mxu0 0.0
        %289 = vmatmul.mubr.f32.gmra.mxu0 %v211
        %v290 = vpop.f32.mrf.mxu0
        %v291 = vadd.f32 0.0, %v290
        %v292 = vpop.f32.mrf.mxu0
        %293 = vmatprep.mubr.f32.mxu0 0.0
        %294 = vmatmul.mubr.f32.gmra.mxu0 %v214
        %v295 = vpop.f32.mrf.mxu0
        %v296 = vadd.f32 0.0, %v295
        %v297 = vpop.f32.mrf.mxu0
        %298 = vmatprep.mubr.f32.mxu0 0.0
        %299 = vmatmul.mubr.f32.gmra.mxu0 %v217
        %v300 = vpop.f32.mrf.mxu0
        %v301 = vadd.f32 0.0, %v300
        %v302 = vpop.f32.mrf.mxu0
        %303 = vdwg.mxu0
        %304 = vmatprep.subr.mxu0 0.0
        %305 = vmatpush1.msra.mxu0 0.0
        %306 = vmatprep.subr.mxu0 0.0
        %307 = vmatpush1.msra.mxu0 0.0
        %308 = vmatprep.subr.mxu0 0.0
        %309 = vmatpush1.msra.mxu0 0.0
        %310 = vmatprep.subr.mxu0 0.0
        %311 = vmatpush1.msra.mxu0 0.0
        %312 = vmatprep.subr.mxu0 0.0
        %313 = vmatpush1.msra.mxu0 0.0
        %314 = vmatprep.subr.mxu0 0.0
        %315 = vmatpush1.msra.mxu0 0.0
        %316 = vmatprep.subr.mxu0 0.0
        %317 = vmatpush1.msra.mxu0 0.0
        %318 = vmatprep.subr.mxu0 0.0
        %319 = vmatpush1.msra.mxu0 0.0
        %320 = vmatprep.subr.mxu0 0.0
        %321 = vmatpush1.msra.mxu0 0.0
        %322 = vmatprep.subr.mxu0 0.0
        %323 = vmatpush1.msra.mxu0 0.0
        %324 = vmatprep.subr.mxu0 0.0
        %325 = vmatpush1.msra.mxu0 0.0
        %326 = vmatprep.subr.mxu0 0.0
        %327 = vmatpush1.msra.mxu0 0.0
        %328 = vmatprep.subr.mxu0 0.0
        %329 = vmatpush1.msra.mxu0 0.0
        %330 = vmatprep.subr.mxu0 0.0
        %331 = vmatpush1.msra.mxu0 0.0
        %332 = vmatprep.subr.mxu0 0.0
        %333 = vmatpush1.msra.mxu0 %v195
        %334 = vmatprep.subr.mxu0 0.0
        %335 = vmatpush1.msra.mxu0 %v194
        %336 = vmatprep.subr.mxu0 0.0
        %337 = vmatpush2.msra.mxu0 0.0
        %338 = vmatprep.subr.mxu0 0.0
        %339 = vmatpush2.msra.mxu0 0.0
        %340 = vmatprep.subr.mxu0 0.0
        %341 = vmatpush2.msra.mxu0 0.0
        %342 = vmatprep.subr.mxu0 0.0
        %343 = vmatpush2.msra.mxu0 0.0
        %344 = vmatprep.subr.mxu0 0.0
        %345 = vmatpush2.msra.mxu0 0.0
        %346 = vmatprep.subr.mxu0 0.0
        %347 = vmatpush2.msra.mxu0 0.0
        %348 = vmatprep.subr.mxu0 0.0
        %349 = vmatpush2.msra.mxu0 0.0
        %350 = vmatprep.subr.mxu0 0.0
        %351 = vmatpush2.msra.mxu0 0.0
        %352 = vmatprep.subr.mxu0 0.0
        %353 = vmatpush2.msra.mxu0 0.0
        %354 = vmatprep.subr.mxu0 0.0
        %355 = vmatpush2.msra.mxu0 0.0
        %356 = vmatprep.subr.mxu0 0.0
        %357 = vmatpush2.msra.mxu0 0.0
        %358 = vmatprep.subr.mxu0 0.0
        %359 = vmatpush2.msra.mxu0 0.0
        %360 = vmatprep.subr.mxu0 0.0
        %361 = vmatpush2.msra.mxu0 0.0
        %362 = vmatprep.subr.mxu0 0.0
        %363 = vmatpush2.msra.mxu0 0.0
        %364 = vmatprep.subr.mxu0 0.0
        %365 = vmatpush2.msra.mxu0 0.0
        %366 = vmatprep.subr.mxu0 0.0
        %367 = vmatpush2.msra.mxu0 0.0
        %368 = vmatprep.mubr.f32.mxu0 0.0
        %369 = vmatmul.mubr.f32.gmra.mxu0 %v208
        %v370 = vpop.f32.mrf.mxu0
        %v371 = vadd.f32 0.0, %v370
        %v372 = vpop.f32.mrf.mxu0
        %373 = vmatprep.mubr.f32.mxu0 0.0
        %374 = vmatmul.mubr.f32.gmra.mxu0 %v211
        %v375 = vpop.f32.mrf.mxu0
        %v376 = vadd.f32 0.0, %v375
        %v377 = vpop.f32.mrf.mxu0
        %378 = vmatprep.mubr.f32.mxu0 0.0
        %379 = vmatmul.mubr.f32.gmra.mxu0 %v214
        %v380 = vpop.f32.mrf.mxu0
        %v381 = vadd.f32 0.0, %v380
        %v382 = vpop.f32.mrf.mxu0
        %383 = vmatprep.mubr.f32.mxu0 0.0
        %384 = vmatmul.mubr.f32.gmra.mxu0 %v217
        %v385 = vpop.f32.mrf.mxu0
        %v386 = vadd.f32 0.0, %v385
        %v387 = vpop.f32.mrf.mxu0
        %388 = vdwg.mxu0
        %389 = vmatprep.subr.mxu0 0.0
        %390 = vmatpush1.msra.mxu0 0.0
        %391 = vmatprep.subr.mxu0 0.0
        %392 = vmatpush1.msra.mxu0 0.0
        %393 = vmatprep.subr.mxu0 0.0
        %394 = vmatpush1.msra.mxu0 0.0
        %395 = vmatprep.subr.mxu0 0.0
        %396 = vmatpush1.msra.mxu0 0.0
        %397 = vmatprep.subr.mxu0 0.0
        %398 = vmatpush1.msra.mxu0 0.0
        %399 = vmatprep.subr.mxu0 0.0
        %400 = vmatpush1.msra.mxu0 0.0
        %401 = vmatprep.subr.mxu0 0.0
        %402 = vmatpush1.msra.mxu0 0.0
        %403 = vmatprep.subr.mxu0 0.0
        %404 = vmatpush1.msra.mxu0 0.0
        %405 = vmatprep.subr.mxu0 0.0
        %406 = vmatpush1.msra.mxu0 0.0
        %407 = vmatprep.subr.mxu0 0.0
        %408 = vmatpush1.msra.mxu0 0.0
        %409 = vmatprep.subr.mxu0 0.0
        %410 = vmatpush1.msra.mxu0 0.0
        %411 = vmatprep.subr.mxu0 0.0
        %412 = vmatpush1.msra.mxu0 0.0
        %413 = vmatprep.subr.mxu0 0.0
        %414 = vmatpush1.msra.mxu0 0.0
        %415 = vmatprep.subr.mxu0 0.0
        %416 = vmatpush1.msra.mxu0 0.0
        %417 = vmatprep.subr.mxu0 0.0
        %418 = vmatpush1.msra.mxu0 %v197
        %419 = vmatprep.subr.mxu0 0.0
        %420 = vmatpush1.msra.mxu0 %v196
        %421 = vmatprep.subr.mxu0 0.0
        %422 = vmatpush2.msra.mxu0 0.0
        %423 = vmatprep.subr.mxu0 0.0
        %424 = vmatpush2.msra.mxu0 0.0
        %425 = vmatprep.subr.mxu0 0.0
        %426 = vmatpush2.msra.mxu0 0.0
        %427 = vmatprep.subr.mxu0 0.0
        %428 = vmatpush2.msra.mxu0 0.0
        %429 = vmatprep.subr.mxu0 0.0
        %430 = vmatpush2.msra.mxu0 0.0
        %431 = vmatprep.subr.mxu0 0.0
        %432 = vmatpush2.msra.mxu0 0.0
        %433 = vmatprep.subr.mxu0 0.0
        %434 = vmatpush2.msra.mxu0 0.0
        %435 = vmatprep.subr.mxu0 0.0
        %436 = vmatpush2.msra.mxu0 0.0
        %437 = vmatprep.subr.mxu0 0.0
        %438 = vmatpush2.msra.mxu0 0.0
        %439 = vmatprep.subr.mxu0 0.0
        %440 = vmatpush2.msra.mxu0 0.0
        %441 = vmatprep.subr.mxu0 0.0
        %442 = vmatpush2.msra.mxu0 0.0
        %443 = vmatprep.subr.mxu0 0.0
        %444 = vmatpush2.msra.mxu0 0.0
        %445 = vmatprep.subr.mxu0 0.0
        %446 = vmatpush2.msra.mxu0 0.0
        %447 = vmatprep.subr.mxu0 0.0
        %448 = vmatpush2.msra.mxu0 0.0
        %449 = vmatprep.subr.mxu0 0.0
        %450 = vmatpush2.msra.mxu0 0.0
        %451 = vmatprep.subr.mxu0 0.0
        %452 = vmatpush2.msra.mxu0 0.0
        %453 = vmatprep.mubr.f32.mxu0 0.0
        %454 = vmatmul.mubr.f32.gmra.mxu0 %v208
        %v455 = vpop.f32.mrf.mxu0
        %v456 = vadd.f32 0.0, %v455
        %v457 = vpop.f32.mrf.mxu0
        %458 = vmatprep.mubr.f32.mxu0 0.0
        %459 = vmatmul.mubr.f32.gmra.mxu0 %v211
        %v460 = vpop.f32.mrf.mxu0
        %v461 = vadd.f32 0.0, %v460
        %v462 = vpop.f32.mrf.mxu0
        %463 = vmatprep.mubr.f32.mxu0 0.0
        %464 = vmatmul.mubr.f32.gmra.mxu0 %v214
        %v465 = vpop.f32.mrf.mxu0
        %v466 = vadd.f32 0.0, %v465
        %v467 = vpop.f32.mrf.mxu0
        %468 = vmatprep.mubr.f32.mxu0 0.0
        %469 = vmatmul.mubr.f32.gmra.mxu0 %v217
        %v470 = vpop.f32.mrf.mxu0
        %v471 = vadd.f32 0.0, %v470
        %v472 = vpop.f32.mrf.mxu0
        %473 = vdwg.mxu0
        %474 = vmatprep.subr.mxu0 0.0
        %475 = vmatpush1.msra.mxu0 0.0
        %476 = vmatprep.subr.mxu0 0.0
        %477 = vmatpush1.msra.mxu0 0.0
        %478 = vmatprep.subr.mxu0 0.0
        %479 = vmatpush1.msra.mxu0 0.0
        %480 = vmatprep.subr.mxu0 0.0
        %481 = vmatpush1.msra.mxu0 0.0
        %482 = vmatprep.subr.mxu0 0.0
        %483 = vmatpush1.msra.mxu0 0.0
        %484 = vmatprep.subr.mxu0 0.0
        %485 = vmatpush1.msra.mxu0 0.0
        %486 = vmatprep.subr.mxu0 0.0
        %487 = vmatpush1.msra.mxu0 0.0
        %488 = vmatprep.subr.mxu0 0.0
        %489 = vmatpush1.msra.mxu0 0.0
        %490 = vmatprep.subr.mxu0 0.0
        %491 = vmatpush1.msra.mxu0 0.0
        %492 = vmatprep.subr.mxu0 0.0
        %493 = vmatpush1.msra.mxu0 0.0
        %494 = vmatprep.subr.mxu0 0.0
        %495 = vmatpush1.msra.mxu0 0.0
        %496 = vmatprep.subr.mxu0 0.0
        %497 = vmatpush1.msra.mxu0 0.0
        %498 = vmatprep.subr.mxu0 0.0
        %499 = vmatpush1.msra.mxu0 0.0
        %500 = vmatprep.subr.mxu0 0.0
        %501 = vmatpush1.msra.mxu0 0.0
        %502 = vmatprep.subr.mxu0 0.0
        %503 = vmatpush1.msra.mxu0 %v199
        %504 = vmatprep.subr.mxu0 0.0
        %505 = vmatpush1.msra.mxu0 %v198
        %506 = vmatprep.subr.mxu0 0.0
        %507 = vmatpush2.msra.mxu0 0.0
        %508 = vmatprep.subr.mxu0 0.0
        %509 = vmatpush2.msra.mxu0 0.0
        %510 = vmatprep.subr.mxu0 0.0
        %511 = vmatpush2.msra.mxu0 0.0
        %512 = vmatprep.subr.mxu0 0.0
        %513 = vmatpush2.msra.mxu0 0.0
        %514 = vmatprep.subr.mxu0 0.0
        %515 = vmatpush2.msra.mxu0 0.0
        %516 = vmatprep.subr.mxu0 0.0
        %517 = vmatpush2.msra.mxu0 0.0
        %518 = vmatprep.subr.mxu0 0.0
        %519 = vmatpush2.msra.mxu0 0.0
        %520 = vmatprep.subr.mxu0 0.0
        %521 = vmatpush2.msra.mxu0 0.0
        %522 = vmatprep.subr.mxu0 0.0
        %523 = vmatpush2.msra.mxu0 0.0
        %524 = vmatprep.subr.mxu0 0.0
        %525 = vmatpush2.msra.mxu0 0.0
        %526 = vmatprep.subr.mxu0 0.0
        %527 = vmatpush2.msra.mxu0 0.0
        %528 = vmatprep.subr.mxu0 0.0
        %529 = vmatpush2.msra.mxu0 0.0
        %530 = vmatprep.subr.mxu0 0.0
        %531 = vmatpush2.msra.mxu0 0.0
        %532 = vmatprep.subr.mxu0 0.0
        %533 = vmatpush2.msra.mxu0 0.0
        %534 = vmatprep.subr.mxu0 0.0
        %535 = vmatpush2.msra.mxu0 0.0
        %536 = vmatprep.subr.mxu0 0.0
        %537 = vmatpush2.msra.mxu0 0.0
        %538 = vmatprep.mubr.f32.mxu0 0.0
        %539 = vmatmul.mubr.f32.gmra.mxu0 %v208
        %v540 = vpop.f32.mrf.mxu0
        %v541 = vadd.f32 0.0, %v540
        %v542 = vpop.f32.mrf.mxu0
        %543 = vmatprep.mubr.f32.mxu0 0.0
        %544 = vmatmul.mubr.f32.gmra.mxu0 %v211
        %v545 = vpop.f32.mrf.mxu0
        %v546 = vadd.f32 0.0, %v545
        %v547 = vpop.f32.mrf.mxu0
        %548 = vmatprep.mubr.f32.mxu0 0.0
        %549 = vmatmul.mubr.f32.gmra.mxu0 %v214
        %v550 = vpop.f32.mrf.mxu0
        %v551 = vadd.f32 0.0, %v550
        %v552 = vpop.f32.mrf.mxu0
        %553 = vmatprep.mubr.f32.mxu0 0.0
        %554 = vmatmul.mubr.f32.gmra.mxu0 %v217
        %v555 = vpop.f32.mrf.mxu0
        %v556 = vadd.f32 0.0, %v555
        %v557 = vpop.f32.mrf.mxu0
        %558 = vdwg.mxu0
        %v560 = vsel %vm206, %v286, 0
        %v563 = vsel %vm206, %v291, 0
        %v566 = vsel %vm206, %v296, 0
        %v569 = vsel %vm206, %v301, 0
        %571 = vmatprep.subr.mxu0 0.0
        %572 = vmatpush1.msra.mxu0 0.0
        %573 = vmatprep.subr.mxu0 0.0
        %574 = vmatpush1.msra.mxu0 0.0
        %575 = vmatprep.subr.mxu0 0.0
        %576 = vmatpush1.msra.mxu0 0.0
        %577 = vmatprep.subr.mxu0 0.0
        %578 = vmatpush1.msra.mxu0 0.0
        %579 = vmatprep.subr.mxu0 0.0
        %580 = vmatpush1.msra.mxu0 0.0
        %581 = vmatprep.subr.mxu0 0.0
        %582 = vmatpush1.msra.mxu0 0.0
        %583 = vmatprep.subr.mxu0 0.0
        %584 = vmatpush1.msra.mxu0 0.0
        %585 = vmatprep.subr.mxu0 0.0
        %586 = vmatpush1.msra.mxu0 0.0
        %587 = vmatprep.subr.mxu0 0.0
        %588 = vmatpush1.msra.mxu0 0.0
        %589 = vmatprep.subr.mxu0 0.0
        %590 = vmatpush1.msra.mxu0 0.0
        %591 = vmatprep.subr.mxu0 0.0
        %592 = vmatpush1.msra.mxu0 0.0
        %593 = vmatprep.subr.mxu0 0.0
        %594 = vmatpush1.msra.mxu0 0.0
        %595 = vmatprep.subr.mxu0 0.0
        %596 = vmatpush1.msra.mxu0 0.0
        %597 = vmatprep.subr.mxu0 0.0
        %598 = vmatpush1.msra.mxu0 0.0
        %599 = vmatprep.subr.mxu0 0.0
        %600 = vmatpush1.msra.mxu0 %v205
        %601 = vmatprep.subr.mxu0 0.0
        %602 = vmatpush1.msra.mxu0 %v204
        %603 = vmatprep.subr.mxu0 0.0
        %604 = vmatpush2.msra.mxu0 0.0
        %605 = vmatprep.subr.mxu0 0.0
        %606 = vmatpush2.msra.mxu0 0.0
        %607 = vmatprep.subr.mxu0 0.0
        %608 = vmatpush2.msra.mxu0 0.0
        %609 = vmatprep.subr.mxu0 0.0
        %610 = vmatpush2.msra.mxu0 0.0
        %611 = vmatprep.subr.mxu0 0.0
        %612 = vmatpush2.msra.mxu0 0.0
        %613 = vmatprep.subr.mxu0 0.0
        %614 = vmatpush2.msra.mxu0 0.0
        %615 = vmatprep.subr.mxu0 0.0
        %616 = vmatpush2.msra.mxu0 0.0
        %617 = vmatprep.subr.mxu0 0.0
        %618 = vmatpush2.msra.mxu0 0.0
        %619 = vmatprep.subr.mxu0 0.0
        %620 = vmatpush2.msra.mxu0 0.0
        %621 = vmatprep.subr.mxu0 0.0
        %622 = vmatpush2.msra.mxu0 0.0
        %623 = vmatprep.subr.mxu0 0.0
        %624 = vmatpush2.msra.mxu0 0.0
        %625 = vmatprep.subr.mxu0 0.0
        %626 = vmatpush2.msra.mxu0 0.0
        %627 = vmatprep.subr.mxu0 0.0
        %628 = vmatpush2.msra.mxu0 0.0
        %629 = vmatprep.subr.mxu0 0.0
        %630 = vmatpush2.msra.mxu0 0.0
        %631 = vmatprep.subr.mxu0 0.0
        %632 = vmatpush2.msra.mxu0 0.0
        %633 = vmatprep.subr.mxu0 0.0
        %634 = vmatpush2.msra.mxu0 0.0
        %635 = vmatprep.mubr.f32.mxu0 0.0
        %636 = vmatmul.mubr.f32.gmra.mxu0 %v560
        %v637 = vpop.f32.mrf.mxu0
        %v638 = vadd.f32 0.0, %v637
        %v639 = vpop.f32.mrf.mxu0
        %640 = vmatprep.mubr.f32.mxu0 0.0
        %641 = vmatmul.mubr.f32.gmra.mxu0 %v563
        %v642 = vpop.f32.mrf.mxu0
        %v643 = vadd.f32 0.0, %v642
        %v644 = vpop.f32.mrf.mxu0
        %645 = vmatprep.mubr.f32.mxu0 0.0
        %646 = vmatmul.mubr.f32.gmra.mxu0 %v566
        %v647 = vpop.f32.mrf.mxu0
        %v648 = vadd.f32 0.0, %v647
        %v649 = vpop.f32.mrf.mxu0
        %650 = vmatprep.mubr.f32.mxu0 0.0
        %651 = vmatmul.mubr.f32.gmra.mxu0 %v569
        %v652 = vpop.f32.mrf.mxu0
        %v653 = vadd.f32 0.0, %v652
        %v654 = vpop.f32.mrf.mxu0
        %655 = vdwg.mxu0
        %v657 = vsel %vm206, %v371, 0
        %v660 = vsel %vm206, %v376, 0
        %v663 = vsel %vm206, %v381, 0
        %v666 = vsel %vm206, %v386, 0
        %668 = vmatprep.subr.mxu0 0.0
        %669 = vmatpush1.msra.mxu0 0.0
        %670 = vmatprep.subr.mxu0 0.0
        %671 = vmatpush1.msra.mxu0 0.0
        %672 = vmatprep.subr.mxu0 0.0
        %673 = vmatpush1.msra.mxu0 0.0
        %674 = vmatprep.subr.mxu0 0.0
        %675 = vmatpush1.msra.mxu0 0.0
        %676 = vmatprep.subr.mxu0 0.0
        %677 = vmatpush1.msra.mxu0 0.0
        %678 = vmatprep.subr.mxu0 0.0
        %679 = vmatpush1.msra.mxu0 0.0
        %680 = vmatprep.subr.mxu0 0.0
        %681 = vmatpush1.msra.mxu0 0.0
        %682 = vmatprep.subr.mxu0 0.0
        %683 = vmatpush1.msra.mxu0 0.0
        %684 = vmatprep.subr.mxu0 0.0
        %685 = vmatpush1.msra.mxu0 0.0
        %686 = vmatprep.subr.mxu0 0.0
        %687 = vmatpush1.msra.mxu0 0.0
        %688 = vmatprep.subr.mxu0 0.0
        %689 = vmatpush1.msra.mxu0 0.0
        %690 = vmatprep.subr.mxu0 0.0
        %691 = vmatpush1.msra.mxu0 0.0
        %692 = vmatprep.subr.mxu0 0.0
        %693 = vmatpush1.msra.mxu0 0.0
        %694 = vmatprep.subr.mxu0 0.0
        %695 = vmatpush1.msra.mxu0 0.0
        %696 = vmatprep.subr.mxu0 0.0
        %697 = vmatpush1.msra.mxu0 %v205
        %698 = vmatprep.subr.mxu0 0.0
        %699 = vmatpush1.msra.mxu0 %v204
        %700 = vmatprep.subr.mxu0 0.0
        %701 = vmatpush2.msra.mxu0 0.0
        %702 = vmatprep.subr.mxu0 0.0
        %703 = vmatpush2.msra.mxu0 0.0
        %704 = vmatprep.subr.mxu0 0.0
        %705 = vmatpush2.msra.mxu0 0.0
        %706 = vmatprep.subr.mxu0 0.0
        %707 = vmatpush2.msra.mxu0 0.0
        %708 = vmatprep.subr.mxu0 0.0
        %709 = vmatpush2.msra.mxu0 0.0
        %710 = vmatprep.subr.mxu0 0.0
        %711 = vmatpush2.msra.mxu0 0.0
        %712 = vmatprep.subr.mxu0 0.0
        %713 = vmatpush2.msra.mxu0 0.0
        %714 = vmatprep.subr.mxu0 0.0
        %715 = vmatpush2.msra.mxu0 0.0
        %716 = vmatprep.subr.mxu0 0.0
        %717 = vmatpush2.msra.mxu0 0.0
        %718 = vmatprep.subr.mxu0 0.0
        %719 = vmatpush2.msra.mxu0 0.0
        %720 = vmatprep.subr.mxu0 0.0
        %721 = vmatpush2.msra.mxu0 0.0
        %722 = vmatprep.subr.mxu0 0.0
        %723 = vmatpush2.msra.mxu0 0.0
        %724 = vmatprep.subr.mxu0 0.0
        %725 = vmatpush2.msra.mxu0 0.0
        %726 = vmatprep.subr.mxu0 0.0
        %727 = vmatpush2.msra.mxu0 0.0
        %728 = vmatprep.subr.mxu0 0.0
        %729 = vmatpush2.msra.mxu0 0.0
        %730 = vmatprep.subr.mxu0 0.0
        %731 = vmatpush2.msra.mxu0 0.0
        %732 = vmatprep.mubr.f32.mxu0 0.0
        %733 = vmatmul.mubr.f32.gmra.mxu0 %v657
        %v734 = vpop.f32.mrf.mxu0
        %v735 = vadd.f32 0.0, %v734
        %v736 = vpop.f32.mrf.mxu0
        %737 = vmatprep.mubr.f32.mxu0 0.0
        %738 = vmatmul.mubr.f32.gmra.mxu0 %v660
        %v739 = vpop.f32.mrf.mxu0
        %v740 = vadd.f32 0.0, %v739
        %v741 = vpop.f32.mrf.mxu0
        %742 = vmatprep.mubr.f32.mxu0 0.0
        %743 = vmatmul.mubr.f32.gmra.mxu0 %v663
        %v744 = vpop.f32.mrf.mxu0
        %v745 = vadd.f32 0.0, %v744
        %v746 = vpop.f32.mrf.mxu0
        %747 = vmatprep.mubr.f32.mxu0 0.0
        %748 = vmatmul.mubr.f32.gmra.mxu0 %v666
        %v749 = vpop.f32.mrf.mxu0
        %v750 = vadd.f32 0.0, %v749
        %v751 = vpop.f32.mrf.mxu0
        %752 = vdwg.mxu0
        %v754 = vsel %vm206, %v456, 0
        %v757 = vsel %vm206, %v461, 0
        %v760 = vsel %vm206, %v466, 0
        %v763 = vsel %vm206, %v471, 0
        %765 = vmatprep.subr.mxu0 0.0
        %766 = vmatpush1.msra.mxu0 0.0
        %767 = vmatprep.subr.mxu0 0.0
        %768 = vmatpush1.msra.mxu0 0.0
        %769 = vmatprep.subr.mxu0 0.0
        %770 = vmatpush1.msra.mxu0 0.0
        %771 = vmatprep.subr.mxu0 0.0
        %772 = vmatpush1.msra.mxu0 0.0
        %773 = vmatprep.subr.mxu0 0.0
        %774 = vmatpush1.msra.mxu0 0.0
        %775 = vmatprep.subr.mxu0 0.0
        %776 = vmatpush1.msra.mxu0 0.0
        %777 = vmatprep.subr.mxu0 0.0
        %778 = vmatpush1.msra.mxu0 0.0
        %779 = vmatprep.subr.mxu0 0.0
        %780 = vmatpush1.msra.mxu0 0.0
        %781 = vmatprep.subr.mxu0 0.0
        %782 = vmatpush1.msra.mxu0 0.0
        %783 = vmatprep.subr.mxu0 0.0
        %784 = vmatpush1.msra.mxu0 0.0
        %785 = vmatprep.subr.mxu0 0.0
        %786 = vmatpush1.msra.mxu0 0.0
        %787 = vmatprep.subr.mxu0 0.0
        %788 = vmatpush1.msra.mxu0 0.0
        %789 = vmatprep.subr.mxu0 0.0
        %790 = vmatpush1.msra.mxu0 0.0
        %791 = vmatprep.subr.mxu0 0.0
        %792 = vmatpush1.msra.mxu0 0.0
        %793 = vmatprep.subr.mxu0 0.0
        %794 = vmatpush1.msra.mxu0 %v205
        %795 = vmatprep.subr.mxu0 0.0
        %796 = vmatpush1.msra.mxu0 %v204
        %797 = vmatprep.subr.mxu0 0.0
        %798 = vmatpush2.msra.mxu0 0.0
        %799 = vmatprep.subr.mxu0 0.0
        %800 = vmatpush2.msra.mxu0 0.0
        %801 = vmatprep.subr.mxu0 0.0
        %802 = vmatpush2.msra.mxu0 0.0
        %803 = vmatprep.subr.mxu0 0.0
        %804 = vmatpush2.msra.mxu0 0.0
        %805 = vmatprep.subr.mxu0 0.0
        %806 = vmatpush2.msra.mxu0 0.0
        %807 = vmatprep.subr.mxu0 0.0
        %808 = vmatpush2.msra.mxu0 0.0
        %809 = vmatprep.subr.mxu0 0.0
        %810 = vmatpush2.msra.mxu0 0.0
        %811 = vmatprep.subr.mxu0 0.0
        %812 = vmatpush2.msra.mxu0 0.0
        %813 = vmatprep.subr.mxu0 0.0
        %814 = vmatpush2.msra.mxu0 0.0
        %815 = vmatprep.subr.mxu0 0.0
        %816 = vmatpush2.msra.mxu0 0.0
        %817 = vmatprep.subr.mxu0 0.0
        %818 = vmatpush2.msra.mxu0 0.0
        %819 = vmatprep.subr.mxu0 0.0
        %820 = vmatpush2.msra.mxu0 0.0
        %821 = vmatprep.subr.mxu0 0.0
        %822 = vmatpush2.msra.mxu0 0.0
        %823 = vmatprep.subr.mxu0 0.0
        %824 = vmatpush2.msra.mxu0 0.0
        %825 = vmatprep.subr.mxu0 0.0
        %826 = vmatpush2.msra.mxu0 0.0
        %827 = vmatprep.subr.mxu0 0.0
        %828 = vmatpush2.msra.mxu0 0.0
        %829 = vmatprep.mubr.f32.mxu0 0.0
        %830 = vmatmul.mubr.f32.gmra.mxu0 %v754
        %v831 = vpop.f32.mrf.mxu0
        %v832 = vadd.f32 0.0, %v831
        %v833 = vpop.f32.mrf.mxu0
        %834 = vmatprep.mubr.f32.mxu0 0.0
        %835 = vmatmul.mubr.f32.gmra.mxu0 %v757
        %v836 = vpop.f32.mrf.mxu0
        %v837 = vadd.f32 0.0, %v836
        %v838 = vpop.f32.mrf.mxu0
        %839 = vmatprep.mubr.f32.mxu0 0.0
        %840 = vmatmul.mubr.f32.gmra.mxu0 %v760
        %v841 = vpop.f32.mrf.mxu0
        %v842 = vadd.f32 0.0, %v841
        %v843 = vpop.f32.mrf.mxu0
        %844 = vmatprep.mubr.f32.mxu0 0.0
        %845 = vmatmul.mubr.f32.gmra.mxu0 %v763
        %v846 = vpop.f32.mrf.mxu0
        %v847 = vadd.f32 0.0, %v846
        %v848 = vpop.f32.mrf.mxu0
        %849 = vdwg.mxu0
        %v851 = vsel %vm206, %v541, 0
        %v854 = vsel %vm206, %v546, 0
        %v857 = vsel %vm206, %v551, 0
        %v860 = vsel %vm206, %v556, 0
        %862 = vmatprep.subr.mxu0 0.0
        %863 = vmatpush1.msra.mxu0 0.0
        %864 = vmatprep.subr.mxu0 0.0
        %865 = vmatpush1.msra.mxu0 0.0
        %866 = vmatprep.subr.mxu0 0.0
        %867 = vmatpush1.msra.mxu0 0.0
        %868 = vmatprep.subr.mxu0 0.0
        %869 = vmatpush1.msra.mxu0 0.0
        %870 = vmatprep.subr.mxu0 0.0
        %871 = vmatpush1.msra.mxu0 0.0
        %872 = vmatprep.subr.mxu0 0.0
        %873 = vmatpush1.msra.mxu0 0.0
        %874 = vmatprep.subr.mxu0 0.0
        %875 = vmatpush1.msra.mxu0 0.0
        %876 = vmatprep.subr.mxu0 0.0
        %877 = vmatpush1.msra.mxu0 0.0
        %878 = vmatprep.subr.mxu0 0.0
        %879 = vmatpush1.msra.mxu0 0.0
        %880 = vmatprep.subr.mxu0 0.0
        %881 = vmatpush1.msra.mxu0 0.0
        %882 = vmatprep.subr.mxu0 0.0
        %883 = vmatpush1.msra.mxu0 0.0
        %884 = vmatprep.subr.mxu0 0.0
        %885 = vmatpush1.msra.mxu0 0.0
        %886 = vmatprep.subr.mxu0 0.0
        %887 = vmatpush1.msra.mxu0 0.0
        %888 = vmatprep.subr.mxu0 0.0
        %889 = vmatpush1.msra.mxu0 0.0
        %890 = vmatprep.subr.mxu0 0.0
        %891 = vmatpush1.msra.mxu0 %v205
        %892 = vmatprep.subr.mxu0 0.0
        %893 = vmatpush1.msra.mxu0 %v204
        %894 = vmatprep.subr.mxu0 0.0
        %895 = vmatpush2.msra.mxu0 0.0
        %896 = vmatprep.subr.mxu0 0.0
        %897 = vmatpush2.msra.mxu0 0.0
        %898 = vmatprep.subr.mxu0 0.0
        %899 = vmatpush2.msra.mxu0 0.0
        %900 = vmatprep.subr.mxu0 0.0
        %901 = vmatpush2.msra.mxu0 0.0
        %902 = vmatprep.subr.mxu0 0.0
        %903 = vmatpush2.msra.mxu0 0.0
        %904 = vmatprep.subr.mxu0 0.0
        %905 = vmatpush2.msra.mxu0 0.0
        %906 = vmatprep.subr.mxu0 0.0
        %907 = vmatpush2.msra.mxu0 0.0
        %908 = vmatprep.subr.mxu0 0.0
        %909 = vmatpush2.msra.mxu0 0.0
        %910 = vmatprep.subr.mxu0 0.0
        %911 = vmatpush2.msra.mxu0 0.0
        %912 = vmatprep.subr.mxu0 0.0
        %913 = vmatpush2.msra.mxu0 0.0
        %914 = vmatprep.subr.mxu0 0.0
        %915 = vmatpush2.msra.mxu0 0.0
        %916 = vmatprep.subr.mxu0 0.0
        %917 = vmatpush2.msra.mxu0 0.0
        %918 = vmatprep.subr.mxu0 0.0
        %919 = vmatpush2.msra.mxu0 0.0
        %920 = vmatprep.subr.mxu0 0.0
        %921 = vmatpush2.msra.mxu0 0.0
        %922 = vmatprep.subr.mxu0 0.0
        %923 = vmatpush2.msra.mxu0 0.0
        %924 = vmatprep.subr.mxu0 0.0
        %925 = vmatpush2.msra.mxu0 0.0
        %926 = vmatprep.mubr.f32.mxu0 0.0
        %927 = vmatmul.mubr.f32.gmra.mxu0 %v851
        %v928 = vpop.f32.mrf.mxu0
        %v929 = vadd.f32 0.0, %v928
        %v930 = vpop.f32.mrf.mxu0
        %931 = vmatprep.mubr.f32.mxu0 0.0
        %932 = vmatmul.mubr.f32.gmra.mxu0 %v854
        %v933 = vpop.f32.mrf.mxu0
        %v934 = vadd.f32 0.0, %v933
        %v935 = vpop.f32.mrf.mxu0
        %936 = vmatprep.mubr.f32.mxu0 0.0
        %937 = vmatmul.mubr.f32.gmra.mxu0 %v857
        %v938 = vpop.f32.mrf.mxu0
        %v939 = vadd.f32 0.0, %v938
        %v940 = vpop.f32.mrf.mxu0
        %941 = vmatprep.mubr.f32.mxu0 0.0
        %942 = vmatmul.mubr.f32.gmra.mxu0 %v860
        %v943 = vpop.f32.mrf.mxu0
        %v944 = vadd.f32 0.0, %v943
        %v945 = vpop.f32.mrf.mxu0
        %946 = vdwg.mxu0
        %vm947 = vcmask 261120
        %948 = vst.msk [vmem:[%s189] sm:$0xff] %vm947, %v638
        %949 = vst.msk [vmem:[%s189 + $0x8] sm:$0xff] %vm947, %v643
        %950 = vst.msk [vmem:[%s189 + $0x10] sm:$0xff] %vm947, %v648
        %951 = vst.msk [vmem:[%s189 + $0x18] sm:$0xff] %vm947, %v653
        %952 = vst.msk [vmem:[%s189 + $0x20] sm:$0xff] %vm947, %v735
        %953 = vst.msk [vmem:[%s189 + $0x28] sm:$0xff] %vm947, %v740
        %954 = vst.msk [vmem:[%s189 + $0x30] sm:$0xff] %vm947, %v745
        %955 = vst.msk [vmem:[%s189 + $0x38] sm:$0xff] %vm947, %v750
        %956 = vst.msk [vmem:[%s189 + $0x40] sm:$0xff] %vm947, %v832
        %957 = vst.msk [vmem:[%s189 + $0x48] sm:$0xff] %vm947, %v837
        %958 = vst.msk [vmem:[%s189 + $0x50] sm:$0xff] %vm947, %v842
        %959 = vst.msk [vmem:[%s189 + $0x58] sm:$0xff] %vm947, %v847
        %960 = vst.msk [vmem:[%s189 + $0x60] sm:$0xff] %vm947, %v929
        %961 = vst.msk [vmem:[%s189 + $0x68] sm:$0xff] %vm947, %v934
        %962 = vst.msk [vmem:[%s189 + $0x70] sm:$0xff] %vm947, %v939
        %963 = vst.msk [vmem:[%s189 + $0x78] sm:$0xff] %vm947, %v944
        %s964 = sand.u32 %s96, 1
        %s965 = scalar_lea.sflag [#allocation4], %s964
        %s966 = sand.u32 %s96, 1
        %s967 = smul.addr %s966, 128
        %s968 = scalar_lea.vmem [#allocation5], %s967
        // Predicated region
        $region37: #{tpu_custom_call.1} parent=31 // pred_check
          %p969 = pneg %p106
        $region38: #{tpu_custom_call.1} parent=31 // pred_check_branch
          %971 = sbr.rel (%p969) target = $region40
        $region39: #{tpu_custom_call.1} parent=31 // pred_region
          %s972 = smul.u32 4, %s20
          %s974 = ssub.s32 2048, 2048
          %975 = vsyncadd %s965, %s974
          %s976 = smul.addr %s972, 4
          %s977 = smul.addr %s976, 128
          %s978 = scalar_lea.hbm %s3, %s977
          %s979 = sshll.u32 %s968, 4
          %s980 = int_to_ptr.vmem [resolvable:$true] %s979
          %985 = dma.vmem_to_hbm [thread:$0]  %s980, 2048, %s978, %s965, 128, 128, 8
        $region40: #{tpu_custom_call.1} parent=31 // pred_fallthru
          _
      $region32: #{tpu_custom_call.1} parent=5 // pred_fallthru
        _
      %p986 = scmp.le.s32.totalorder 2, %s15
      // Predicated region
      $region41: #{tpu_custom_call.1} parent=5 // pred_check
        %p987 = pneg %p986
      $region42: #{tpu_custom_call.1} parent=5 // pred_check_branch
        %989 = sbr.rel (%p987) target = $region44
      $region43: #{tpu_custom_call.1} parent=5 // pred_region
        %s990 = ssub.s32 %s15, 2
        // Predicated region
        $region45: #{tpu_custom_call.1} parent=43 // pred_check
          %p991 = pneg %p112
        $region46: #{tpu_custom_call.1} parent=43 // pred_check_branch
          %993 = sbr.rel (%p991) target = $region48
        $region47: #{tpu_custom_call.1} parent=43 // pred_region
          %s994 = sand.u32 %s97, 1
          %s995 = scalar_lea.sflag [#allocation4], %s994
          %s996 = sand.u32 %s97, 1
          %s997 = smul.addr %s996, 128
          %s998 = scalar_lea.vmem [#allocation5], %s997
          %999 = dma.done %s995, 2048
        $region48: #{tpu_custom_call.1} parent=43 // pred_fallthru
          _
      $region44: #{tpu_custom_call.1} parent=5 // pred_fallthru
        _
    $region6: #{tpu_custom_call.1} parent=1 // loop_footer
      %s19 = sadd.s32 1, %s15
    $region7: #{tpu_custom_call.1} parent=1 // loop_footer_branch
      %14 = sbr.rel target = $region3
    $region8: #{tpu_custom_call.1} parent=1 // loop_exit
      _
    %1000 = vsyncpa [#allocation3], 1
    %s1001 = scalar_lea.sflag [#allocation3], 1
    %1002 = vsyncpa %s1001, 1
    %1003 = vsyncpa [#allocation4], 1
    %s1004 = scalar_lea.sflag [#allocation4], 1
    %1005 = vsyncpa %s1004, 1

</llo_original>
